<compile_context>
chip_gen: v6e
topology: v6e:2x2x1
jax: 0.10.0
libtpu: 0.0.40
codegen_flags: <defaults>
</compile_context>

<pallas_src>
import functools

import jax
import jax.numpy as jnp
from jax.experimental import pallas as pl
from jax.experimental.pallas import tpu as pltpu


def gcn_group_kernel(adj_t_ref, x_t_ref, w_t_ref, b_ref, o_t_ref, *, num_layers):
    """Full GCN stack for one group of graphs, transposed (feature-major) layout.

    adj_t_ref : (1, GN, GN)  block-diagonal TRANSPOSED adjacency for this group,
                             adj_t[src, dst] = 1 iff edge src->dst within one graph
    x_t_ref   : (D, GN)      node features, transposed: x_t[d, g*N + n]
    w_t_ref   : (L, D, D)    per-layer GraphConv weights, pre-transposed (W^T)
    b_ref     : (L, D, 1)    per-layer biases as column vectors
    o_t_ref   : (D, GN)      output node features (transposed layout, lane-dense)
    """
    a_t = adj_t_ref[0].astype(jnp.float32)                    # (GN, GN)

    # Symmetric 'both' normalization, computed once per group, reused for every layer.
    # (Block-diagonal => row/col sums are exactly the per-graph out/in degrees.)
    deg_src = jnp.sum(a_t, axis=1, keepdims=True)              # (GN, 1) out-degrees
    deg_dst = jnp.sum(a_t, axis=0, keepdims=True)              # (1, GN) in-degrees
    norm_src = jnp.where(deg_src > 0, jax.lax.rsqrt(deg_src), 0.0)
    norm_dst = jnp.where(deg_dst > 0, jax.lax.rsqrt(deg_dst), 0.0)
    an_t = (norm_src * a_t * norm_dst).astype(jnp.bfloat16)    # (A_norm)^T, bf16 MXU operand

    h = x_t_ref[...].astype(jnp.float32)                       # (D, GN)
    for l in range(num_layers):                                 # static unroll (L is small)
        w_t = w_t_ref[l].astype(jnp.bfloat16)                   # (D, D) = W^T
        # shared feature transform: one (D,D)x(D,GN) matmul (W^T h^T), f32 accumulate
        z = jnp.dot(w_t, h.astype(jnp.bfloat16),
                    preferred_element_type=jnp.float32)
        # per-graph aggregation: one (D,GN)x(GN,GN) matmul vs block-diag A_norm^T, + bias
        h = jnp.dot(z.astype(jnp.bfloat16), an_t,
                    preferred_element_type=jnp.float32) + b_ref[l]
    o_t_ref[...] = h.astype(o_t_ref.dtype)                     # lane-dense (D, 128*) store


def gcn_forward(adj, in_feat, w_stack, b_stack, *, graphs_per_step=8):
    """Runs the GraphConv stack for a batch of graphs in a single pallas_call.

    adj     : (B, N, N) f32, adj[g, dst, src] = 1 iff edge src->dst in graph g
    in_feat : (B, N, D) f32 node features
    w_stack : (L, D, D) f32 per-layer weights
    b_stack : (L, D)    f32 per-layer biases
    returns : (B, N, D) f32
    """
    bsz, n, d = in_feat.shape
    num_layers = w_stack.shape[0]
    gb = graphs_per_step

    # Pad the batch with empty graphs so it divides evenly into groups.
    pad = (-bsz) % gb
    if pad:
        adj = jnp.concatenate([adj, jnp.zeros((pad, n, n), adj.dtype)], axis=0)
        in_feat = jnp.concatenate([in_feat, jnp.zeros((pad, n, d), in_feat.dtype)], axis=0)
    bp = bsz + pad
    num_groups = bp // gb
    gn = gb * n                                    # lanes per block (128 for gb=8, n=16)

    # Block-diagonal transposed adjacency per group; bf16 is exact for {0,1}.
    adj_t = jnp.swapaxes(adj, 1, 2).reshape(num_groups, gb, n, n)
    eye = jnp.eye(gb, dtype=adj.dtype)
    adj_t_bd = jnp.einsum("ab,gaij->gaibj", eye, adj_t).reshape(num_groups, gn, gn)
    adj_t_bd = adj_t_bd.astype(jnp.bfloat16)

    # Transposed, lane-dense feature layout: x_t[d, g*N + n].
    x_t = in_feat.reshape(bp * n, d).T             # (D, B*N)
    w_t_stack = jnp.swapaxes(w_stack, 1, 2)        # pre-transposed weights (W^T)
    b_col = b_stack[:, :, None]                    # (L, D, 1) bias columns

    kernel = functools.partial(gcn_group_kernel, num_layers=num_layers)
    out_t = pl.pallas_call(
        kernel,
        out_shape=jax.ShapeDtypeStruct((d, bp * n), jnp.float32),
        grid=(num_groups,),
        in_specs=[
            pl.BlockSpec((1, gn, gn), lambda i: (i, 0, 0)),            # group adjacency
            pl.BlockSpec((d, gn), lambda i: (0, i)),                   # group features
            pl.BlockSpec((num_layers, d, d), lambda i: (0, 0, 0)),     # shared weights
            pl.BlockSpec((num_layers, d, 1), lambda i: (0, 0, 0)),     # shared biases
        ],
        out_specs=pl.BlockSpec((d, gn), lambda i: (0, i)),
        compiler_params=pltpu.CompilerParams(
            dimension_semantics=("parallel",)),     # v7x: groups split across both TCs
    )(adj_t_bd, x_t, w_t_stack, b_col)

    return out_t.T.reshape(bp, n, d)[:bsz]


def init_gcn_params(key, d_model, num_layers):
    """Deterministic xavier-uniform weights + small biases (bias path exercised)."""
    ws, bs = [], []
    limit = (6.0 / (d_model + d_model)) ** 0.5
    for li in range(num_layers):
        kw, kb = jax.random.split(jax.random.fold_in(key, li))
        ws.append(jax.random.uniform(kw, (d_model, d_model), jnp.float32, -limit, limit))
        bs.append(0.1 * jax.random.normal(kb, (d_model,), jnp.float32))
    return jnp.stack(ws), jnp.stack(bs)


def _norm_adj(adj):
    deg_dst = adj.sum(axis=2, keepdims=True)       # (B, N, 1) in-degrees
    deg_src = adj.sum(axis=1, keepdims=True)       # (B, 1, N) out-degrees
    norm_dst = jnp.where(deg_dst > 0, jax.lax.rsqrt(deg_dst), 0.0)
    norm_src = jnp.where(deg_src > 0, jax.lax.rsqrt(deg_src), 0.0)
    return norm_dst * adj * norm_src


def reference_gcn_f32(adj, in_feat, w_stack, b_stack):
    """Pure-JAX f32 reference of the GraphConv stack."""
    a_norm = _norm_adj(adj)
    h = in_feat
    for l in range(w_stack.shape[0]):
        h = jnp.einsum("bmn,bnd->bmd", a_norm, h @ w_stack[l]) + b_stack[l]
    return h


def reference_gcn_bf16(adj, in_feat, w_stack, b_stack):
    """Pure-JAX reference mirroring the kernel's bf16-operand / f32-accumulate matmuls."""
    a_norm = _norm_adj(adj).astype(jnp.bfloat16)
    h = in_feat
    for l in range(w_stack.shape[0]):
        hw = jnp.einsum("bnd,de->bne", h.astype(jnp.bfloat16),
                        w_stack[l].astype(jnp.bfloat16),
                        preferred_element_type=jnp.float32)
        h = jnp.einsum("bmn,bnd->bmd", a_norm, hw.astype(jnp.bfloat16),
                       preferred_element_type=jnp.float32) + b_stack[l]
    return h


if __name__ == "__main__":
    # config: d_model=32, num_graph_layers=2 ; batch of 12 graphs with N=16 nodes each
    d_model = 32
    num_layers = 2
    n_nodes = 16
    batch_graphs = 12        # padded to 16 inside the wrapper -> grid of 2 groups of 8 graphs

    key = jax.random.PRNGKey(0)
    k_feat, k_adj, k_par = jax.random.split(key, 3)

    in_feat = jax.random.normal(k_feat, (batch_graphs, n_nodes, d_model), jnp.float32)

    # deterministic graphs: random sparse edges + self-loops (guarantees degree >= 1,
    # matching DGL's requirement of no zero-in-degree nodes); adj[g, dst, src]
    rand_adj = (jax.random.uniform(k_adj, (batch_graphs, n_nodes, n_nodes)) < 0.25).astype(jnp.float32)
    adj = jnp.maximum(rand_adj, jnp.eye(n_nodes, dtype=jnp.float32)[None])

    w_stack, b_stack = init_gcn_params(k_par, d_model, num_layers)

    out = gcn_forward(adj, in_feat, w_stack, b_stack, graphs_per_step=8)
    out = jax.block_until_ready(out)

    assert out.shape == (batch_graphs, n_nodes, d_model)
    assert bool(jnp.all(jnp.isfinite(out)))

    ref_bf16 = reference_gcn_bf16(adj, in_feat, w_stack, b_stack)
    ref_f32 = reference_gcn_f32(adj, in_feat, w_stack, b_stack)
    assert bool(jnp.allclose(out, ref_bf16, atol=1e-2, rtol=1e-2))   # mirrors kernel precision
    assert bool(jnp.allclose(out, ref_f32, atol=6e-2, rtol=6e-2))    # sanity vs full f32

    print("KERNEL_OK")
</pallas_src>

<mosaic_0001>
module attributes {stable_mosaic.version = 11 : i64} {
  func.func @gcn_group_kernel(%arg0: i32, %arg1: memref<1x128x128xbf16, #tpu.memory_space<vmem>>, %arg2: memref<32x128xf32, #tpu.memory_space<vmem>>, %arg3: memref<2x32x32xf32, #tpu.memory_space<vmem>>, %arg4: memref<2x32x1xf32, #tpu.memory_space<vmem>>, %arg5: memref<32x128xf32, #tpu.memory_space<vmem>>) attributes {dimension_semantics = [#tpu.dimension_semantics<parallel>], iteration_bounds = array<i64: 2>, scalar_prefetch = 0 : i64, scratch_operands = 0 : i64, tpu.core_type = #tpu.core_type<tc>, window_params = [{transform_indices = @transform_0, window_bounds = array<i64: 1, 128, 128>}, {transform_indices = @transform_1, window_bounds = array<i64: 32, 128>}, {pipeline_mode = #tpu.pipeline_mode<synchronous>, transform_indices = @transform_2, window_bounds = array<i64: 2, 32, 32>}, {pipeline_mode = #tpu.pipeline_mode<synchronous>, transform_indices = @transform_3, window_bounds = array<i64: 2, 32, 1>}, {transform_indices = @transform_4, window_bounds = array<i64: 32, 128>}]} {
    %c0 = arith.constant 0 : index
    %c0_0 = arith.constant 0 : index
    %c0_1 = arith.constant 0 : index
    %0 = vector.load %arg1[%c0, %c0_0, %c0_1] : memref<1x128x128xbf16, #tpu.memory_space<vmem>>, vector<1x128x128xbf16>
    %1 = vector.shape_cast %0 : vector<1x128x128xbf16> to vector<128x128xbf16>
    %2 = arith.extf %1 : vector<128x128xbf16> to vector<128x128xf32>
    %cst = arith.constant dense<0.000000e+00> : vector<128xf32>
    %3 = vector.multi_reduction <add>, %2, %cst [1] : vector<128x128xf32> to vector<128xf32>
    %4 = vector.shape_cast %3 : vector<128xf32> to vector<128x1xf32>
    %cst_2 = arith.constant dense<0.000000e+00> : vector<128xf32>
    %5 = vector.multi_reduction <add>, %2, %cst_2 [0] : vector<128x128xf32> to vector<128xf32>
    %6 = vector.shape_cast %5 : vector<128xf32> to vector<1x128xf32>
    %cst_3 = arith.constant 0.000000e+00 : f32
    %7 = vector.broadcast %cst_3 : f32 to vector<128x1xf32>
    %8 = arith.cmpf ogt, %4, %7 : vector<128x1xf32>
    %9 = math.rsqrt %4 : vector<128x1xf32>
    %cst_4 = arith.constant 0.000000e+00 : f32
    %10 = vector.broadcast %cst_4 : f32 to vector<128x1xf32>
    %11 = arith.select %8, %9, %10 : vector<128x1xi1>, vector<128x1xf32>
    %cst_5 = arith.constant 0.000000e+00 : f32
    %12 = vector.broadcast %cst_5 : f32 to vector<1x128xf32>
    %13 = arith.cmpf ogt, %6, %12 : vector<1x128xf32>
    %14 = math.rsqrt %6 : vector<1x128xf32>
    %cst_6 = arith.constant 0.000000e+00 : f32
    %15 = vector.broadcast %cst_6 : f32 to vector<1x128xf32>
    %16 = arith.select %13, %14, %15 : vector<1x128xi1>, vector<1x128xf32>
    %17 = vector.broadcast %11 : vector<128x1xf32> to vector<128x128xf32>
    %18 = arith.mulf %17, %2 : vector<128x128xf32>
    %19 = vector.broadcast %16 : vector<1x128xf32> to vector<128x128xf32>
    %20 = arith.mulf %18, %19 : vector<128x128xf32>
    %21 = arith.truncf %20 : vector<128x128xf32> to vector<128x128xbf16>
    %c0_7 = arith.constant 0 : index
    %c0_8 = arith.constant 0 : index
    %22 = vector.load %arg2[%c0_7, %c0_8] : memref<32x128xf32, #tpu.memory_space<vmem>>, vector<32x128xf32>
    %c0_9 = arith.constant 0 : index
    %c0_10 = arith.constant 0 : index
    %c0_11 = arith.constant 0 : index
    %23 = vector.load %arg3[%c0_9, %c0_10, %c0_11] : memref<2x32x32xf32, #tpu.memory_space<vmem>>, vector<1x32x32xf32>
    %24 = vector.shape_cast %23 : vector<1x32x32xf32> to vector<32x32xf32>
    %25 = arith.truncf %24 : vector<32x32xf32> to vector<32x32xbf16>
    %26 = arith.truncf %22 : vector<32x128xf32> to vector<32x128xbf16>
    %cst_12 = arith.constant dense<0.000000e+00> : vector<32x128xf32>
    %27 = tpu.matmul %25, %26, %cst_12 {dimension_numbers = #tpu.dot_dimension_numbers<[1], [0], [0], [1], [0, 0, 1, 1], [], []>} : vector<32x32xbf16>, vector<32x128xbf16>, vector<32x128xf32> -> vector<32x128xf32>
    %28 = arith.truncf %27 : vector<32x128xf32> to vector<32x128xbf16>
    %cst_13 = arith.constant dense<0.000000e+00> : vector<32x128xf32>
    %29 = tpu.matmul %28, %21, %cst_13 {dimension_numbers = #tpu.dot_dimension_numbers<[1], [0], [0], [1], [0, 0, 1, 1], [], []>} : vector<32x128xbf16>, vector<128x128xbf16>, vector<32x128xf32> -> vector<32x128xf32>
    %c0_14 = arith.constant 0 : index
    %c0_15 = arith.constant 0 : index
    %c0_16 = arith.constant 0 : index
    %30 = vector.load %arg4[%c0_14, %c0_15, %c0_16] : memref<2x32x1xf32, #tpu.memory_space<vmem>>, vector<1x32x1xf32>
    %31 = vector.shape_cast %30 : vector<1x32x1xf32> to vector<32x1xf32>
    %32 = vector.broadcast %31 : vector<32x1xf32> to vector<32x128xf32>
    %33 = arith.addf %29, %32 : vector<32x128xf32>
    %c1 = arith.constant 1 : index
    %c0_17 = arith.constant 0 : index
    %c0_18 = arith.constant 0 : index
    %34 = vector.load %arg3[%c1, %c0_17, %c0_18] : memref<2x32x32xf32, #tpu.memory_space<vmem>>, vector<1x32x32xf32>
    %35 = vector.shape_cast %34 : vector<1x32x32xf32> to vector<32x32xf32>
    %36 = arith.truncf %35 : vector<32x32xf32> to vector<32x32xbf16>
    %37 = arith.truncf %33 : vector<32x128xf32> to vector<32x128xbf16>
    %cst_19 = arith.constant dense<0.000000e+00> : vector<32x128xf32>
    %38 = tpu.matmul %36, %37, %cst_19 {dimension_numbers = #tpu.dot_dimension_numbers<[1], [0], [0], [1], [0, 0, 1, 1], [], []>} : vector<32x32xbf16>, vector<32x128xbf16>, vector<32x128xf32> -> vector<32x128xf32>
    %39 = arith.truncf %38 : vector<32x128xf32> to vector<32x128xbf16>
    %cst_20 = arith.constant dense<0.000000e+00> : vector<32x128xf32>
    %40 = tpu.matmul %39, %21, %cst_20 {dimension_numbers = #tpu.dot_dimension_numbers<[1], [0], [0], [1], [0, 0, 1, 1], [], []>} : vector<32x128xbf16>, vector<128x128xbf16>, vector<32x128xf32> -> vector<32x128xf32>
    %c1_21 = arith.constant 1 : index
    %c0_22 = arith.constant 0 : index
    %c0_23 = arith.constant 0 : index
    %41 = vector.load %arg4[%c1_21, %c0_22, %c0_23] : memref<2x32x1xf32, #tpu.memory_space<vmem>>, vector<1x32x1xf32>
    %42 = vector.shape_cast %41 : vector<1x32x1xf32> to vector<32x1xf32>
    %43 = vector.broadcast %42 : vector<32x1xf32> to vector<32x128xf32>
    %44 = arith.addf %40, %43 : vector<32x128xf32>
    %c0_24 = arith.constant 0 : index
    %c0_25 = arith.constant 0 : index
    %45 = vector.load %arg5[%c0_24, %c0_25] : memref<32x128xf32, #tpu.memory_space<vmem>>, vector<32x128xf32>
    tpu.vector_store %arg5[%c0_24, %c0_25], %44 {strides = array<i32>} : memref<32x128xf32, #tpu.memory_space<vmem>>, vector<32x128xf32>,
    return
  }
  func.func @transform_0(%arg0: i32) -> (i32, i32, i32) {
    %c0_i32 = arith.constant 0 : i32
    %c0_i32_0 = arith.constant 0 : i32
    %c0_i32_1 = arith.constant 0 : i32
    return %arg0, %c0_i32, %c0_i32_0 : i32, i32, i32
  }
  func.func @transform_1(%arg0: i32) -> (i32, i32) {
    %c0_i32 = arith.constant 0 : i32
    %c0_i32_0 = arith.constant 0 : i32
    return %c0_i32, %arg0 : i32, i32
  }
  func.func @transform_2(%arg0: i32) -> (i32, i32, i32) {
    %c0_i32 = arith.constant 0 : i32
    %c0_i32_0 = arith.constant 0 : i32
    %c0_i32_1 = arith.constant 0 : i32
    %c0_i32_2 = arith.constant 0 : i32
    return %c0_i32, %c0_i32_0, %c0_i32_1 : i32, i32, i32
  }
  func.func @transform_3(%arg0: i32) -> (i32, i32, i32) {
    %c0_i32 = arith.constant 0 : i32
    %c0_i32_0 = arith.constant 0 : i32
    %c0_i32_1 = arith.constant 0 : i32
    %c0_i32_2 = arith.constant 0 : i32
    return %c0_i32, %c0_i32_0, %c0_i32_1 : i32, i32, i32
  }
  func.func @transform_4(%arg0: i32) -> (i32, i32) {
    %c0_i32 = arith.constant 0 : i32
    %c0_i32_0 = arith.constant 0 : i32
    return %c0_i32, %arg0 : i32, i32
  }
}

</mosaic_0001>

<llo_original>
// kernel: tpu_custom_call.1
$region0: #{tpu_custom_call.1}
  #allocation0 [shape = 'u32[]', space=smem, size = 0x4, offset = 0x4, fixed_abs, tag = 'smem constant byte address 0x4 - core index']
  #allocation1 [shape = 'u32[144,128]{1,0:T(1,128)}', space=vmem, size = 0x12000, scoped, tag = 'internal scratch']
  %s0 = inlined_call_operand.hbm [shape: bf16[2,128,128], index: 0, kind: input, shape index: {}]
  %s1 = inlined_call_operand.vmem [shape: f32[32,256], index: 1, kind: input, shape index: {}]
  %s2 = inlined_call_operand.hbm [shape: f32[2,32,32], index: 2, kind: input, shape index: {}]
  %s3 = inlined_call_operand.vmem [shape: f32[2,32,1], index: 3, kind: input, shape index: {}]
  %s4 = inlined_call_operand.hbm [shape: f32[32,256], index: 4, kind: output, shape index: {}]
  %s5 = sld [smem:[#allocation0]]
  $region95: #{tpu_custom_call.1} parent=0
    _
  %s7 = ssub.s32 1, %s5
  %s8 = scalar_select 0, %s7, %s5
  $region1: #{tpu_custom_call.1} parent=0
    #allocation2 [shape = 'u8[65536]{0}', space=vmem, size = 0x10000, scoped, tag = 'input window, operand 0']
    #allocation3 [shape = 's32[2]{0}', space=sflag, size = 0x8, scoped, tag = 'scoped memory for tpu_custom_call.1']
    #allocation4 [shape = 's32[2]{0}', space=sflag, size = 0x8, scoped, tag = 'scoped memory for tpu_custom_call.1']
    #allocation5 [shape = 'u8[32768]{0}', space=vmem, size = 0x8000, scoped, tag = 'input window, operand 1']
    #allocation6 [shape = 'u8[32768]{0}', space=vmem, size = 0x8000, scoped, tag = 'input window, operand 2, single buffered']
    #allocation7 [shape = 's32[1]{0}', space=sflag, size = 0x4, scoped, tag = 'scoped memory for tpu_custom_call.1']
    #allocation8 [shape = 'u8[32768]{0}', space=vmem, size = 0x8000, scoped, tag = 'output window, operand 0']
    %9 = vsyncpa [#allocation3], 0
    %s10 = scalar_lea.sflag [#allocation3], 1
    %11 = vsyncpa %s10, 0
    %12 = vsyncpa [#allocation7], 0
    %13 = vsyncpa [#allocation4], 0
    %s14 = scalar_lea.sflag [#allocation4], 1
    %15 = vsyncpa %s14, 0
    loop: start=0, step=1, limit=4
    $region2: #{tpu_custom_call.1} parent=1 // loop_pre_header
      _
    $region3: #{tpu_custom_call.1} parent=1 // loop_header
      %s17 = sphi 0, %s21
      %p18 = scmp.ge.s32.totalorder %s17, 4
      %s27 = sphi 0, %s29
      %s30 = sphi 0, %s27
      %s31 = sphi 0, %s30
      %s47 = sphi 0, %s31
      %s53 = sphi 0, %s55
      %s56 = sphi 0, %s53
      %s57 = sphi 0, %s56
      %s73 = sphi 0, %s57
      %s77 = sphi 0, %s77
      %s79 = sphi 0, %s77
      %s80 = sphi 0, %s79
      %s94 = sphi 0, %s80
      %s98 = sphi 0, %s98
      %s100 = sphi 0, %s98
      %s101 = sphi 0, %s100
      %s115 = sphi 0, %s101
      %s121 = sphi 0, %s123
      %s124 = sphi 0, %s121
      %s125 = sphi 0, %s124
      %s141 = sphi 0, %s125
    $region4: #{tpu_custom_call.1} parent=1 // loop_header_branch
      %20 = sbr.rel (%p18) target = $region8
    $region5: #{tpu_custom_call.1} parent=1 // loop_body
      %s22 = ssub.s32 %s17, 1
      %s23 = ssub.s32 %s17, 2
      %s24 = sadd.s32 %s17, 1
      %s25 = ssub.s32 %s17, %s24
      %p26 = scmp.eq.s32.totalorder %s25, 0
      %s28 = sadd.s32 %s27, 1
      %s29 = scalar_select %p26, %s27, %s28
      %p32 = pneg %p26
      %p33 = scmp.eq.s32.totalorder %s17, 1
      %p34 = por %p32, %p33
      %p35 = scmp.ne.s32.totalorder %s27, %s30
      %p36 = scmp.eq.s32.totalorder %s17, 0
      %p37 = por %p35, %p36
      %p38 = scmp.ne.s32.totalorder %s27, %s30
      %p39 = scmp.eq.s32.totalorder %s22, 1
      %p40 = por %p38, %p39
      %p41 = scmp.ne.s32.totalorder %s30, %s31
      %p42 = scmp.eq.s32.totalorder %s22, 0
      %p43 = por %p41, %p42
      %p44 = scmp.ne.s32.totalorder %s30, %s31
      %p45 = scmp.eq.s32.totalorder %s23, 1
      %p46 = por %p44, %p45
      %p48 = scmp.ne.s32.totalorder %s31, %s47
      %p49 = scmp.eq.s32.totalorder %s23, 0
      %p50 = por %p48, %p49
      %s51 = ssub.s32 %s17, %s24
      %p52 = scmp.eq.s32.totalorder %s51, 0
      %s54 = sadd.s32 %s53, 1
      %s55 = scalar_select %p52, %s53, %s54
      %p58 = pneg %p52
      %p59 = scmp.eq.s32.totalorder %s17, 1
      %p60 = por %p58, %p59
      %p61 = scmp.ne.s32.totalorder %s53, %s56
      %p62 = scmp.eq.s32.totalorder %s17, 0
      %p63 = por %p61, %p62
      %p64 = scmp.ne.s32.totalorder %s53, %s56
      %p65 = scmp.eq.s32.totalorder %s22, 1
      %p66 = por %p64, %p65
      %p67 = scmp.ne.s32.totalorder %s56, %s57
      %p68 = scmp.eq.s32.totalorder %s22, 0
      %p69 = por %p67, %p68
      %p70 = scmp.ne.s32.totalorder %s56, %s57
      %p71 = scmp.eq.s32.totalorder %s23, 1
      %p72 = por %p70, %p71
      %p74 = scmp.ne.s32.totalorder %s57, %s73
      %p75 = scmp.eq.s32.totalorder %s23, 0
      %p76 = por %p74, %p75
      %s78 = sadd.s32 %s77, 1
      %p81 = scmp.eq.s32.totalorder %s17, 1
      %p82 = scmp.ne.s32.totalorder %s77, %s79
      %p83 = scmp.eq.s32.totalorder %s17, 0
      %p84 = por %p82, %p83
      %p85 = scmp.ne.s32.totalorder %s77, %s79
      %p86 = scmp.eq.s32.totalorder %s22, 1
      %p87 = por %p85, %p86
      %p88 = scmp.ne.s32.totalorder %s79, %s80
      %p89 = scmp.eq.s32.totalorder %s22, 0
      %p90 = por %p88, %p89
      %p91 = scmp.ne.s32.totalorder %s79, %s80
      %p92 = scmp.eq.s32.totalorder %s23, 1
      %p93 = por %p91, %p92
      %p95 = scmp.ne.s32.totalorder %s80, %s94
      %p96 = scmp.eq.s32.totalorder %s23, 0
      %p97 = por %p95, %p96
      %s99 = sadd.s32 %s98, 1
      %p102 = scmp.eq.s32.totalorder %s17, 1
      %p103 = scmp.ne.s32.totalorder %s98, %s100
      %p104 = scmp.eq.s32.totalorder %s17, 0
      %p105 = por %p103, %p104
      %p106 = scmp.ne.s32.totalorder %s98, %s100
      %p107 = scmp.eq.s32.totalorder %s22, 1
      %p108 = por %p106, %p107
      %p109 = scmp.ne.s32.totalorder %s100, %s101
      %p110 = scmp.eq.s32.totalorder %s22, 0
      %p111 = por %p109, %p110
      %p112 = scmp.ne.s32.totalorder %s100, %s101
      %p113 = scmp.eq.s32.totalorder %s23, 1
      %p114 = por %p112, %p113
      %p116 = scmp.ne.s32.totalorder %s101, %s115
      %p117 = scmp.eq.s32.totalorder %s23, 0
      %p118 = por %p116, %p117
      %s119 = ssub.s32 %s17, %s24
      %p120 = scmp.eq.s32.totalorder %s119, 0
      %s122 = sadd.s32 %s121, 1
      %s123 = scalar_select %p120, %s121, %s122
      %p126 = pneg %p120
      %p127 = scmp.eq.s32.totalorder %s17, 1
      %p128 = por %p126, %p127
      %p129 = scmp.ne.s32.totalorder %s121, %s124
      %p130 = scmp.eq.s32.totalorder %s17, 0
      %p131 = por %p129, %p130
      %p132 = scmp.ne.s32.totalorder %s121, %s124
      %p133 = scmp.eq.s32.totalorder %s22, 1
      %p134 = por %p132, %p133
      %p135 = scmp.ne.s32.totalorder %s124, %s125
      %p136 = scmp.eq.s32.totalorder %s22, 0
      %p137 = por %p135, %p136
      %p138 = scmp.ne.s32.totalorder %s124, %s125
      %p139 = scmp.eq.s32.totalorder %s23, 1
      %p140 = por %p138, %p139
      %p142 = scmp.ne.s32.totalorder %s125, %s141
      %p143 = scmp.eq.s32.totalorder %s23, 0
      %p144 = por %p142, %p143
      %p145 = scmp.le.s32.totalorder 1, %s17
      %p146 = scmp.lt.s32.totalorder %s17, 3
      %p147 = pnand %p145, %p146
      %p148 = pneg %p147
      // Predicated region
      $region9: #{tpu_custom_call.1} parent=5 // pred_check
        _
      $region10: #{tpu_custom_call.1} parent=5 // pred_check_branch
        %150 = sbr.rel (%p147) target = $region12
      $region11: #{tpu_custom_call.1} parent=5 // pred_region
        %s151 = ssub.s32 %s17, 1
        // Predicated region
        $region13: #{tpu_custom_call.1} parent=11 // pred_check
          %p152 = pneg %p90
        $region14: #{tpu_custom_call.1} parent=11 // pred_check_branch
          %154 = sbr.rel (%p152) target = $region16
        $region15: #{tpu_custom_call.1} parent=11 // pred_region
          %s156 = ssub.s32 1024, 1024
          %157 = vsyncadd [#allocation7], %s156
          %s158 = sshll.u32 [#allocation6], 4
          %s159 = int_to_ptr.vmem [resolvable:$true] %s158
          %164 = dma.hbm_to_vmem [thread:$0]  %s2, 1024, %s159, [#allocation7], 128, 128, 8
        $region16: #{tpu_custom_call.1} parent=11 // pred_fallthru
          _
        // Predicated region
        $region17: #{tpu_custom_call.1} parent=11 // pred_check
          %p165 = pneg %p111
        $region18: #{tpu_custom_call.1} parent=11 // pred_check_branch
          %167 = sbr.rel (%p165) target = $region20
        $region19: #{tpu_custom_call.1} parent=11 // pred_region
          _
        $region20: #{tpu_custom_call.1} parent=11 // pred_fallthru
          _
      $region12: #{tpu_custom_call.1} parent=5 // pred_fallthru
        _
      %p168 = scmp.lt.s32.totalorder %s17, 2
      // Predicated region
      $region21: #{tpu_custom_call.1} parent=5 // pred_check
        %p169 = pneg %p168
      $region22: #{tpu_custom_call.1} parent=5 // pred_check_branch
        %171 = sbr.rel (%p169) target = $region24
      $region23: #{tpu_custom_call.1} parent=5 // pred_region
        // Predicated region
        $region25: #{tpu_custom_call.1} parent=23 // pred_check
          %p172 = pneg %p37
        $region26: #{tpu_custom_call.1} parent=23 // pred_check_branch
          %174 = sbr.rel (%p172) target = $region28
        $region27: #{tpu_custom_call.1} parent=23 // pred_region
          %s175 = sand.u32 %s27, 1
          %s176 = scalar_lea.sflag [#allocation3], %s175
          %s177 = sand.u32 %s27, 1
          %s178 = smul.addr %s177, 64
          %s179 = scalar_lea.vmem [#allocation2], %s178
          %s181 = ssub.s32 1024, 1024
          %182 = vsyncadd %s176, %s181
          %s183 = smul.addr %s17, 16
          %s184 = smul.addr %s183, 64
          %s185 = scalar_lea.hbm %s0, %s184
          %s186 = sshll.u32 %s179, 4
          %s187 = int_to_ptr.vmem [resolvable:$true] %s186
          %192 = dma.hbm_to_vmem [thread:$0]  %s185, 1024, %s187, %s176, 64, 64, 4
        $region28: #{tpu_custom_call.1} parent=23 // pred_fallthru
          _
        // Predicated region
        $region29: #{tpu_custom_call.1} parent=23 // pred_check
          %p193 = pneg %p63
        $region30: #{tpu_custom_call.1} parent=23 // pred_check_branch
          %195 = sbr.rel (%p193) target = $region32
        $region31: #{tpu_custom_call.1} parent=23 // pred_region
          %s196 = sand.u32 %s53, 1
          %s197 = sand.u32 %s53, 1
          %s198 = smul.addr %s197, 32
          %s199 = scalar_lea.vmem [#allocation5], %s198
          %s200 = smul.addr %s17, 8
          %s201 = scalar_lea.vmem %s1, %s200
          // Predicated region
          $region33: #{tpu_custom_call.1} parent=31 // pred_check
            _
          $region34: #{tpu_custom_call.1} parent=31 // pred_check_branch
            %203 = sbr.rel (0) target = $region36
          $region35: #{tpu_custom_call.1} parent=31 // pred_region
            // Predicated region
            $region37: #{tpu_custom_call.1} parent=35 // pred_check
              _
            $region38: #{tpu_custom_call.1} parent=35 // pred_check_branch
              %205 = sbr.rel (0) target = $region40
            $region39: #{tpu_custom_call.1} parent=35 // pred_region
              // Predicated region
              $region52: #{tpu_custom_call.1} parent=39 // pred_check
                _
              $region53: #{tpu_custom_call.1} parent=39 // pred_check_branch
                %227 = sbr.rel (0) target = $region55
              $region54: #{tpu_custom_call.1} parent=39 // pred_region
                loop: start=0, step=1, limit=1
                $region56: #{tpu_custom_call.1} parent=54 // loop_pre_header
                  _
                $region57: #{tpu_custom_call.1} parent=54 // loop_header
                  %s229 = sphi 0, %s233
                  %p230 = scmp.ge.s32.totalorder %s229, 1
                  %s234 = sphi %s201, %s201
                  %s235 = sphi %s199, %s199
                $region58: #{tpu_custom_call.1} parent=54 // loop_header_branch
                  %232 = sbr.rel (%p230) target = $region62
                $region59: #{tpu_custom_call.1} parent=54 // loop_body
                  %v236 = vld [vmem:[%s234] sm:$0xff]
                  %237 = vst [vmem:[%s235] sm:$0xff] %v236
                  %v238 = vld [vmem:[%s234 + $0x10] sm:$0xff]
                  %239 = vst [vmem:[%s235 + $0x8] sm:$0xff] %v238
                  %v240 = vld [vmem:[%s234 + $0x20] sm:$0xff]
                  %241 = vst [vmem:[%s235 + $0x10] sm:$0xff] %v240
                  %v242 = vld [vmem:[%s234 + $0x30] sm:$0xff]
                  %243 = vst [vmem:[%s235 + $0x18] sm:$0xff] %v242
                $region60: #{tpu_custom_call.1} parent=54 // loop_footer
                  %s233 = sadd.s32 1, %s229
                $region61: #{tpu_custom_call.1} parent=54 // loop_footer_branch
                  %228 = sbr.rel target = $region57
                $region62: #{tpu_custom_call.1} parent=54 // loop_exit
                  _
              $region55: #{tpu_custom_call.1} parent=39 // pred_fallthru
                _
              // Predicated region
              $region63: #{tpu_custom_call.1} parent=39 // pred_check
                _
              $region64: #{tpu_custom_call.1} parent=39 // pred_check_branch
                %245 = sbr.rel target = $region66
              $region65: #{tpu_custom_call.1} parent=39 // pred_region
                _
              $region66: #{tpu_custom_call.1} parent=39 // pred_fallthru
                _
            $region40: #{tpu_custom_call.1} parent=35 // pred_fallthru
              _
            // Predicated region
            $region41: #{tpu_custom_call.1} parent=35 // pred_check
              _
            $region42: #{tpu_custom_call.1} parent=35 // pred_check_branch
              %207 = sbr.rel target = $region44
            $region43: #{tpu_custom_call.1} parent=35 // pred_region
              %s209 = ssub.s32 256, 1
              loop: start=0, step=1, limit=1
              $region45: #{tpu_custom_call.1} parent=43 // loop_pre_header
                _
              $region46: #{tpu_custom_call.1} parent=43 // loop_header
                %s211 = sphi 0, %s215
                %p212 = scmp.ge.s32.totalorder %s211, 1
                %s216 = sphi %s201, %s201
                %s217 = sphi %s199, %s199
              $region47: #{tpu_custom_call.1} parent=43 // loop_header_branch
                %214 = sbr.rel (%p212) target = $region51
              $region48: #{tpu_custom_call.1} parent=43 // loop_body
                %v218 = vld [vmem:[%s216] sm:%s209]
                %219 = vst [vmem:[%s217] sm:%s209] %v218
                %v220 = vld [vmem:[%s216 + $0x10] sm:%s209]
                %221 = vst [vmem:[%s217 + $0x8] sm:%s209] %v220
                %v222 = vld [vmem:[%s216 + $0x20] sm:%s209]
                %223 = vst [vmem:[%s217 + $0x10] sm:%s209] %v222
                %v224 = vld [vmem:[%s216 + $0x30] sm:%s209]
                %225 = vst [vmem:[%s217 + $0x18] sm:%s209] %v224
              $region49: #{tpu_custom_call.1} parent=43 // loop_footer
                %s215 = sadd.s32 1, %s211
              $region50: #{tpu_custom_call.1} parent=43 // loop_footer_branch
                %210 = sbr.rel target = $region46
              $region51: #{tpu_custom_call.1} parent=43 // loop_exit
                _
            $region44: #{tpu_custom_call.1} parent=35 // pred_fallthru
              _
          $region36: #{tpu_custom_call.1} parent=31 // pred_fallthru
            _
          %246 = vnop
        $region32: #{tpu_custom_call.1} parent=23 // pred_fallthru
          _
      $region24: #{tpu_custom_call.1} parent=5 // pred_fallthru
        _
      %p247 = scmp.le.s32.totalorder 1, %s17
      %p248 = scmp.lt.s32.totalorder %s17, 3
      %p249 = pnand %p247, %p248
      %p250 = pneg %p249
      // Predicated region
      $region67: #{tpu_custom_call.1} parent=5 // pred_check
        _
      $region68: #{tpu_custom_call.1} parent=5 // pred_check_branch
        %252 = sbr.rel (%p249) target = $region70
      $region69: #{tpu_custom_call.1} parent=5 // pred_region
        %s253 = ssub.s32 %s17, 1
        %s254 = sand.u32 %s30, 1
        %s255 = scalar_lea.sflag [#allocation3], %s254
        %s256 = sand.u32 %s30, 1
        %s257 = smul.addr %s256, 64
        %s258 = scalar_lea.vmem [#allocation2], %s257
        // Predicated region
        $region71: #{tpu_custom_call.1} parent=69 // pred_check
          %p259 = pneg %p43
        $region72: #{tpu_custom_call.1} parent=69 // pred_check_branch
          %261 = sbr.rel (%p259) target = $region74
        $region73: #{tpu_custom_call.1} parent=69 // pred_region
          %262 = dma.done %s255, 1024
        $region74: #{tpu_custom_call.1} parent=69 // pred_fallthru
          _
        %s263 = sand.u32 %s56, 1
        %s264 = sand.u32 %s56, 1
        %s265 = smul.addr %s264, 32
        %s266 = scalar_lea.vmem [#allocation5], %s265
        // Predicated region
        $region75: #{tpu_custom_call.1} parent=69 // pred_check
          %p267 = pneg %p69
        $region76: #{tpu_custom_call.1} parent=69 // pred_check_branch
          %269 = sbr.rel (%p267) target = $region78
        $region77: #{tpu_custom_call.1} parent=69 // pred_region
          _
        $region78: #{tpu_custom_call.1} parent=69 // pred_fallthru
          _
        // Predicated region
        $region79: #{tpu_custom_call.1} parent=69 // pred_check
          %p270 = pneg %p90
        $region80: #{tpu_custom_call.1} parent=69 // pred_check_branch
          %272 = sbr.rel (%p270) target = $region82
        $region81: #{tpu_custom_call.1} parent=69 // pred_region
          %273 = dma.done [#allocation7], 1024
        $region82: #{tpu_custom_call.1} parent=69 // pred_fallthru
          _
        %s274 = sand.u32 %s30, 1
        %s275 = scalar_lea.sflag [#allocation3], %s274
        %s276 = sand.u32 %s30, 1
        %s277 = smul.addr %s276, 64
        %s278 = scalar_lea.vmem [#allocation2], %s277
        %p279 = pneg %p43
        %p280 = pneg %p40
        %s281 = sand.u32 %s56, 1
        %s282 = sand.u32 %s56, 1
        %s283 = smul.addr %s282, 32
        %s284 = scalar_lea.vmem [#allocation5], %s283
        %p285 = pneg %p69
        %p286 = pneg %p66
        %p287 = pneg %p90
        %p288 = pneg %p87
        %p289 = pneg %p111
        %p290 = pneg %p108
        %p291 = pneg %p137
        %p292 = pneg %p134
        %s293 = sand.u32 %s124, 1
        %s294 = scalar_lea.sflag [#allocation4], %s293
        %s295 = sand.u32 %s124, 1
        %s296 = smul.addr %s295, 32
        %s297 = scalar_lea.vmem [#allocation8], %s296
        %v299 = vld [vmem:[%s258] sm:$0xf]
        %v300 = vld [vmem:[%s258 + $0x4] sm:$0xf]
        %v301 = vld [vmem:[%s258 + $0x8] sm:$0xf]
        %v302 = vld [vmem:[%s258 + $0xc] sm:$0xf]
        %v303 = vld [vmem:[%s258 + $0x10] sm:$0xf]
        %v304 = vld [vmem:[%s258 + $0x14] sm:$0xf]
        %v305 = vld [vmem:[%s258 + $0x18] sm:$0xf]
        %v306 = vld [vmem:[%s258 + $0x1c] sm:$0xf]
        %v307 = vld [vmem:[%s258 + $0x20] sm:$0xf]
        %v308 = vld [vmem:[%s258 + $0x24] sm:$0xf]
        %v309 = vld [vmem:[%s258 + $0x28] sm:$0xf]
        %v310 = vld [vmem:[%s258 + $0x2c] sm:$0xf]
        %v311 = vld [vmem:[%s258 + $0x30] sm:$0xf]
        %v312 = vld [vmem:[%s258 + $0x34] sm:$0xf]
        %v313 = vld [vmem:[%s258 + $0x38] sm:$0xf]
        %v314 = vld [vmem:[%s258 + $0x3c] sm:$0xf]
        %v315 = vunpack.c.l.bf16 %v299
        %v316 = vunpack.c.l.bf16 %v300
        %v317 = vunpack.c.l.bf16 %v301
        %v318 = vunpack.c.l.bf16 %v302
        %v319 = vunpack.c.l.bf16 %v303
        %v320 = vunpack.c.l.bf16 %v304
        %v321 = vunpack.c.l.bf16 %v305
        %v322 = vunpack.c.l.bf16 %v306
        %v323 = vunpack.c.l.bf16 %v307
        %v324 = vunpack.c.l.bf16 %v308
        %v325 = vunpack.c.l.bf16 %v309
        %v326 = vunpack.c.l.bf16 %v310
        %v327 = vunpack.c.l.bf16 %v311
        %v328 = vunpack.c.l.bf16 %v312
        %v329 = vunpack.c.l.bf16 %v313
        %v330 = vunpack.c.l.bf16 %v314
        %331 = vadd.xlane.f32.xlu0 %v315
        %v332 = vpop.xlane.xlu0 %331
        %333 = vadd.xlane.f32.xlu0 %v316
        %v334 = vpop.xlane.xlu0 %333
        %335 = vadd.xlane.f32.xlu0 %v317
        %v336 = vpop.xlane.xlu0 %335
        %337 = vadd.xlane.f32.xlu0 %v318
        %v338 = vpop.xlane.xlu0 %337
        %339 = vadd.xlane.f32.xlu0 %v319
        %v340 = vpop.xlane.xlu0 %339
        %341 = vadd.xlane.f32.xlu0 %v320
        %v342 = vpop.xlane.xlu0 %341
        %343 = vadd.xlane.f32.xlu0 %v321
        %v344 = vpop.xlane.xlu0 %343
        %345 = vadd.xlane.f32.xlu0 %v322
        %v346 = vpop.xlane.xlu0 %345
        %347 = vadd.xlane.f32.xlu0 %v323
        %v348 = vpop.xlane.xlu0 %347
        %349 = vadd.xlane.f32.xlu0 %v324
        %v350 = vpop.xlane.xlu0 %349
        %351 = vadd.xlane.f32.xlu0 %v325
        %v352 = vpop.xlane.xlu0 %351
        %353 = vadd.xlane.f32.xlu0 %v326
        %v354 = vpop.xlane.xlu0 %353
        %355 = vadd.xlane.f32.xlu0 %v327
        %v356 = vpop.xlane.xlu0 %355
        %357 = vadd.xlane.f32.xlu0 %v328
        %v358 = vpop.xlane.xlu0 %357
        %359 = vadd.xlane.f32.xlu0 %v329
        %v360 = vpop.xlane.xlu0 %359
        %361 = vadd.xlane.f32.xlu0 %v330
        %v362 = vpop.xlane.xlu0 %361
        %v363 = vadd.f32 %v315, %v316
        %v364 = vadd.f32 %v363, %v317
        %v365 = vadd.f32 %v364, %v318
        %v366 = vadd.f32 %v365, %v319
        %v367 = vadd.f32 %v366, %v320
        %v368 = vadd.f32 %v367, %v321
        %v369 = vadd.f32 %v368, %v322
        %v370 = vadd.f32 %v369, %v323
        %v371 = vadd.f32 %v370, %v324
        %v372 = vadd.f32 %v371, %v325
        %v373 = vadd.f32 %v372, %v326
        %v374 = vadd.f32 %v373, %v327
        %v375 = vadd.f32 %v374, %v328
        %v376 = vadd.f32 %v375, %v329
        %v377 = vadd.f32 %v376, %v330
        %v378 = vrot.slane %v377, 4
        %v379 = vadd.f32 %v377, %v378
        %v380 = vrot.slane %v379, 2
        %v381 = vadd.f32 %v379, %v380
        %v382 = vrot.slane %v381, 1
        %v383 = vadd.f32 %v381, %v382
        %vm384 = vcmp.gt.f32.partialorder %v332, 0.0
        %vm385 = vcmp.gt.f32.partialorder %v334, 0.0
        %vm386 = vcmp.gt.f32.partialorder %v336, 0.0
        %vm387 = vcmp.gt.f32.partialorder %v338, 0.0
        %vm388 = vcmp.gt.f32.partialorder %v340, 0.0
        %vm389 = vcmp.gt.f32.partialorder %v342, 0.0
        %vm390 = vcmp.gt.f32.partialorder %v344, 0.0
        %vm391 = vcmp.gt.f32.partialorder %v346, 0.0
        %vm392 = vcmp.gt.f32.partialorder %v348, 0.0
        %vm393 = vcmp.gt.f32.partialorder %v350, 0.0
        %vm394 = vcmp.gt.f32.partialorder %v352, 0.0
        %vm395 = vcmp.gt.f32.partialorder %v354, 0.0
        %vm396 = vcmp.gt.f32.partialorder %v356, 0.0
        %vm397 = vcmp.gt.f32.partialorder %v358, 0.0
        %vm398 = vcmp.gt.f32.partialorder %v360, 0.0
        %vm399 = vcmp.gt.f32.partialorder %v362, 0.0
        %v400 = vrsqrt.pop %v332
        %v401 = vrsqrt.pop %v334
        %v402 = vrsqrt.pop %v336
        %v403 = vrsqrt.pop %v338
        %v404 = vrsqrt.pop %v340
        %v405 = vrsqrt.pop %v342
        %v406 = vrsqrt.pop %v344
        %v407 = vrsqrt.pop %v346
        %v408 = vrsqrt.pop %v348
        %v409 = vrsqrt.pop %v350
        %v410 = vrsqrt.pop %v352
        %v411 = vrsqrt.pop %v354
        %v412 = vrsqrt.pop %v356
        %v413 = vrsqrt.pop %v358
        %v414 = vrsqrt.pop %v360
        %v415 = vrsqrt.pop %v362
        %v416 = vsel %vm384, %v400, 0.0
        %v417 = vsel %vm385, %v401, 0.0
        %v418 = vsel %vm386, %v402, 0.0
        %v419 = vsel %vm387, %v403, 0.0
        %v420 = vsel %vm388, %v404, 0.0
        %v421 = vsel %vm389, %v405, 0.0
        %v422 = vsel %vm390, %v406, 0.0
        %v423 = vsel %vm391, %v407, 0.0
        %v424 = vsel %vm392, %v408, 0.0
        %v425 = vsel %vm393, %v409, 0.0
        %v426 = vsel %vm394, %v410, 0.0
        %v427 = vsel %vm395, %v411, 0.0
        %v428 = vsel %vm396, %v412, 0.0
        %v429 = vsel %vm397, %v413, 0.0
        %v430 = vsel %vm398, %v414, 0.0
        %v431 = vsel %vm399, %v415, 0.0
        %vm432 = vcmp.gt.f32.partialorder %v383, 0.0
        %v433 = vrsqrt.pop %v383
        %v434 = vsel %vm432, %v433, 0.0
        %v435 = vmul.f32 %v416, %v315
        %v436 = vmul.f32 %v417, %v316
        %v437 = vmul.f32 %v418, %v317
        %v438 = vmul.f32 %v419, %v318
        %v439 = vmul.f32 %v420, %v319
        %v440 = vmul.f32 %v421, %v320
        %v441 = vmul.f32 %v422, %v321
        %v442 = vmul.f32 %v423, %v322
        %v443 = vmul.f32 %v424, %v323
        %v444 = vmul.f32 %v425, %v324
        %v445 = vmul.f32 %v426, %v325
        %v446 = vmul.f32 %v427, %v326
        %v447 = vmul.f32 %v428, %v327
        %v448 = vmul.f32 %v429, %v328
        %v449 = vmul.f32 %v430, %v329
        %v450 = vmul.f32 %v431, %v330
        %v451 = vmul.f32 %v435, %v434
        %v452 = vmul.f32 %v436, %v434
        %v453 = vmul.f32 %v437, %v434
        %v454 = vmul.f32 %v438, %v434
        %v455 = vmul.f32 %v439, %v434
        %v456 = vmul.f32 %v440, %v434
        %v457 = vmul.f32 %v441, %v434
        %v458 = vmul.f32 %v442, %v434
        %v459 = vmul.f32 %v443, %v434
        %v460 = vmul.f32 %v444, %v434
        %v461 = vmul.f32 %v445, %v434
        %v462 = vmul.f32 %v446, %v434
        %v463 = vmul.f32 %v447, %v434
        %v464 = vmul.f32 %v448, %v434
        %v465 = vmul.f32 %v449, %v434
        %v466 = vmul.f32 %v450, %v434
        %v467 = vpack.c.bf16 %v452, %v451
        %v468 = vpack.c.bf16 %v454, %v453
        %v469 = vpack.c.bf16 %v456, %v455
        %v470 = vpack.c.bf16 %v458, %v457
        %v471 = vpack.c.bf16 %v460, %v459
        %v472 = vpack.c.bf16 %v462, %v461
        %v473 = vpack.c.bf16 %v464, %v463
        %v474 = vpack.c.bf16 %v466, %v465
        %v475 = vld [vmem:[%s266] sm:$0xff]
        %v476 = vld [vmem:[%s266 + $0x8] sm:$0xff]
        %v477 = vld [vmem:[%s266 + $0x10] sm:$0xff]
        %v478 = vld [vmem:[%s266 + $0x18] sm:$0xff]
        %v479 = vld [vmem:[#allocation6] sm:$0xff]
        %v480 = vld [vmem:[#allocation6 + $0x8] sm:$0xff]
        %v481 = vld [vmem:[#allocation6 + $0x10] sm:$0xff]
        %v482 = vld [vmem:[#allocation6 + $0x18] sm:$0xff]
        %v483 = vpack.c.bf16 %v480, %v479
        %v484 = vpack.c.bf16 %v482, %v481
        %v485 = vpack.c.bf16 %v476, %v475
        %v486 = vpack.c.bf16 %v478, %v477
        %vm487 = vcmask 261120
        %v489 = vsel %vm487, %v483, 0
        %v492 = vsel %vm487, %v484, 0
        %494 = vmatprep.subr.bf16.mxu0 0
        %495 = vmatpush1.bf16.msra.mxu0 0
        %496 = vmatprep.subr.bf16.mxu0 0
        %497 = vmatpush1.bf16.msra.mxu0 0
        %498 = vmatprep.subr.bf16.mxu0 0
        %499 = vmatpush1.bf16.msra.mxu0 0
        %500 = vmatprep.subr.bf16.mxu0 0
        %501 = vmatpush1.bf16.msra.mxu0 0
        %502 = vmatprep.subr.bf16.mxu0 0
        %503 = vmatpush1.bf16.msra.mxu0 0
        %504 = vmatprep.subr.bf16.mxu0 0
        %505 = vmatpush1.bf16.msra.mxu0 0
        %506 = vmatprep.subr.bf16.mxu0 0
        %507 = vmatpush1.bf16.msra.mxu0 %v486
        %508 = vmatprep.subr.bf16.mxu0 0
        %509 = vmatpush1.bf16.msra.mxu0 %v485
        %510 = vmatprep.subr.bf16.mxu0 0
        %511 = vmatpush2.bf16.msra.mxu0 0
        %512 = vmatprep.subr.bf16.mxu0 0
        %513 = vmatpush2.bf16.msra.mxu0 0
        %514 = vmatprep.subr.bf16.mxu0 0
        %515 = vmatpush2.bf16.msra.mxu0 0
        %516 = vmatprep.subr.bf16.mxu0 0
        %517 = vmatpush2.bf16.msra.mxu0 0
        %518 = vmatprep.subr.bf16.mxu0 0
        %519 = vmatpush2.bf16.msra.mxu0 0
        %520 = vmatprep.subr.bf16.mxu0 0
        %521 = vmatpush2.bf16.msra.mxu0 0
        %522 = vmatprep.subr.bf16.mxu0 0
        %523 = vmatpush2.bf16.msra.mxu0 0
        %524 = vmatprep.subr.bf16.mxu0 0
        %525 = vmatpush2.bf16.msra.mxu0 0
        %526 = vmatprep.mubr.bf16.mxu0 0
        %527 = vmatmul.mubr.bf16.gmra.mxu0 %v489
        %v528 = vpop.f32.mrf.mxu0
        %v529 = vadd.f32 0.0, %v528
        %v530 = vpop.f32.mrf.mxu0
        %v531 = vpop.f32.mrf.mxu0
        %v532 = vadd.f32 0.0, %v531
        %v533 = vpop.f32.mrf.mxu0
        %534 = vmatprep.mubr.bf16.mxu0 0
        %535 = vmatmul.mubr.bf16.gmra.mxu0 %v492
        %v536 = vpop.f32.mrf.mxu0
        %v537 = vadd.f32 0.0, %v536
        %v538 = vpop.f32.mrf.mxu0
        %v539 = vpop.f32.mrf.mxu0
        %v540 = vadd.f32 0.0, %v539
        %v541 = vpop.f32.mrf.mxu0
        %542 = vdwg.mxu0
        %v543 = vpack.c.bf16 %v532, %v529
        %v544 = vpack.c.bf16 %v540, %v537
        %v545 = vld [vmem:[%s3] sm:$0xff]
        %v546 = vld [vmem:[%s3 + $0x8] sm:$0xff]
        %v547 = vld [vmem:[%s3 + $0x10] sm:$0xff]
        %v548 = vld [vmem:[%s3 + $0x18] sm:$0xff]
        %550 = vset.pattern.permute.xlu0 0
        %551 = vperm.xlu0 %550, %v545
        %v552 = vpop.permute.xlu0 %551
        %555 = vset.pattern.permute.xlu0 0
        %556 = vperm.xlu0 %555, %v546
        %v557 = vpop.permute.xlu0 %556
        %560 = vset.pattern.permute.xlu0 0
        %561 = vperm.xlu0 %560, %v547
        %v562 = vpop.permute.xlu0 %561
        %565 = vset.pattern.permute.xlu0 0
        %566 = vperm.xlu0 %565, %v548
        %v567 = vpop.permute.xlu0 %566
        %569 = vmatprep.subr.bf16.mxu0 0
        %570 = vmatpush1.bf16.msra.mxu0 %v474
        %571 = vmatprep.subr.bf16.mxu0 0
        %572 = vmatpush1.bf16.msra.mxu0 %v473
        %573 = vmatprep.subr.bf16.mxu0 0
        %574 = vmatpush1.bf16.msra.mxu0 %v472
        %575 = vmatprep.subr.bf16.mxu0 0
        %576 = vmatpush1.bf16.msra.mxu0 %v471
        %577 = vmatprep.subr.bf16.mxu0 0
        %578 = vmatpush1.bf16.msra.mxu0 %v470
        %579 = vmatprep.subr.bf16.mxu0 0
        %580 = vmatpush1.bf16.msra.mxu0 %v469
        %581 = vmatprep.subr.bf16.mxu0 0
        %582 = vmatpush1.bf16.msra.mxu0 %v468
        %583 = vmatprep.subr.bf16.mxu0 0
        %584 = vmatpush1.bf16.msra.mxu0 %v467
        %585 = vmatprep.subr.bf16.mxu0 0
        %586 = vmatpush2.bf16.msra.mxu0 0
        %587 = vmatprep.subr.bf16.mxu0 0
        %588 = vmatpush2.bf16.msra.mxu0 0
        %589 = vmatprep.subr.bf16.mxu0 0
        %590 = vmatpush2.bf16.msra.mxu0 0
        %591 = vmatprep.subr.bf16.mxu0 0
        %592 = vmatpush2.bf16.msra.mxu0 0
        %593 = vmatprep.subr.bf16.mxu0 0
        %594 = vmatpush2.bf16.msra.mxu0 0
        %595 = vmatprep.subr.bf16.mxu0 0
        %596 = vmatpush2.bf16.msra.mxu0 0
        %597 = vmatprep.subr.bf16.mxu0 0
        %598 = vmatpush2.bf16.msra.mxu0 0
        %599 = vmatprep.subr.bf16.mxu0 0
        %600 = vmatpush2.bf16.msra.mxu0 0
        %601 = vmatprep.mubr.bf16.mxu0 0
        %602 = vmatmul.mubr.bf16.gmra.mxu0 %v543
        %v603 = vpop.f32.mrf.mxu0
        %v604 = vadd.f32 %v552, %v603
        %v605 = vpop.f32.mrf.mxu0
        %v606 = vpop.f32.mrf.mxu0
        %v607 = vadd.f32 %v557, %v606
        %v608 = vpop.f32.mrf.mxu0
        %609 = vmatprep.mubr.bf16.mxu0 0
        %610 = vmatmul.mubr.bf16.gmra.mxu0 %v544
        %v611 = vpop.f32.mrf.mxu0
        %v612 = vadd.f32 %v562, %v611
        %v613 = vpop.f32.mrf.mxu0
        %v614 = vpop.f32.mrf.mxu0
        %v615 = vadd.f32 %v567, %v614
        %v616 = vpop.f32.mrf.mxu0
        %617 = vdwg.mxu0
        %s618 = scalar_lea.vmem [#allocation6], 32
        %v619 = vld [vmem:[%s618] sm:$0xff]
        %v620 = vld [vmem:[%s618 + $0x8] sm:$0xff]
        %v621 = vld [vmem:[%s618 + $0x10] sm:$0xff]
        %v622 = vld [vmem:[%s618 + $0x18] sm:$0xff]
        %v623 = vpack.c.bf16 %v620, %v619
        %v624 = vpack.c.bf16 %v622, %v621
        %v625 = vpack.c.bf16 %v607, %v604
        %v626 = vpack.c.bf16 %v615, %v612
        %v628 = vsel %vm487, %v623, 0
        %v631 = vsel %vm487, %v624, 0
        %633 = vmatprep.subr.bf16.mxu0 0
        %634 = vmatpush1.bf16.msra.mxu0 0
        %635 = vmatprep.subr.bf16.mxu0 0
        %636 = vmatpush1.bf16.msra.mxu0 0
        %637 = vmatprep.subr.bf16.mxu0 0
        %638 = vmatpush1.bf16.msra.mxu0 0
        %639 = vmatprep.subr.bf16.mxu0 0
        %640 = vmatpush1.bf16.msra.mxu0 0
        %641 = vmatprep.subr.bf16.mxu0 0
        %642 = vmatpush1.bf16.msra.mxu0 0
        %643 = vmatprep.subr.bf16.mxu0 0
        %644 = vmatpush1.bf16.msra.mxu0 0
        %645 = vmatprep.subr.bf16.mxu0 0
        %646 = vmatpush1.bf16.msra.mxu0 %v626
        %647 = vmatprep.subr.bf16.mxu0 0
        %648 = vmatpush1.bf16.msra.mxu0 %v625
        %649 = vmatprep.subr.bf16.mxu0 0
        %650 = vmatpush2.bf16.msra.mxu0 0
        %651 = vmatprep.subr.bf16.mxu0 0
        %652 = vmatpush2.bf16.msra.mxu0 0
        %653 = vmatprep.subr.bf16.mxu0 0
        %654 = vmatpush2.bf16.msra.mxu0 0
        %655 = vmatprep.subr.bf16.mxu0 0
        %656 = vmatpush2.bf16.msra.mxu0 0
        %657 = vmatprep.subr.bf16.mxu0 0
        %658 = vmatpush2.bf16.msra.mxu0 0
        %659 = vmatprep.subr.bf16.mxu0 0
        %660 = vmatpush2.bf16.msra.mxu0 0
        %661 = vmatprep.subr.bf16.mxu0 0
        %662 = vmatpush2.bf16.msra.mxu0 0
        %663 = vmatprep.subr.bf16.mxu0 0
        %664 = vmatpush2.bf16.msra.mxu0 0
        %665 = vmatprep.mubr.bf16.mxu0 0
        %666 = vmatmul.mubr.bf16.gmra.mxu0 %v628
        %v667 = vpop.f32.mrf.mxu0
        %v668 = vadd.f32 0.0, %v667
        %v669 = vpop.f32.mrf.mxu0
        %v670 = vpop.f32.mrf.mxu0
        %v671 = vadd.f32 0.0, %v670
        %v672 = vpop.f32.mrf.mxu0
        %673 = vmatprep.mubr.bf16.mxu0 0
        %674 = vmatmul.mubr.bf16.gmra.mxu0 %v631
        %v675 = vpop.f32.mrf.mxu0
        %v676 = vadd.f32 0.0, %v675
        %v677 = vpop.f32.mrf.mxu0
        %v678 = vpop.f32.mrf.mxu0
        %v679 = vadd.f32 0.0, %v678
        %v680 = vpop.f32.mrf.mxu0
        %681 = vdwg.mxu0
        %v682 = vpack.c.bf16 %v671, %v668
        %v683 = vpack.c.bf16 %v679, %v676
        %s684 = scalar_lea.vmem %s3, 32
        %v685 = vld [vmem:[%s684] sm:$0xff]
        %v686 = vld [vmem:[%s684 + $0x8] sm:$0xff]
        %v687 = vld [vmem:[%s684 + $0x10] sm:$0xff]
        %v688 = vld [vmem:[%s684 + $0x18] sm:$0xff]
        %690 = vset.pattern.permute.xlu0 0
        %691 = vperm.xlu0 %690, %v685
        %v692 = vpop.permute.xlu0 %691
        %695 = vset.pattern.permute.xlu0 0
        %696 = vperm.xlu0 %695, %v686
        %v697 = vpop.permute.xlu0 %696
        %700 = vset.pattern.permute.xlu0 0
        %701 = vperm.xlu0 %700, %v687
        %v702 = vpop.permute.xlu0 %701
        %705 = vset.pattern.permute.xlu0 0
        %706 = vperm.xlu0 %705, %v688
        %v707 = vpop.permute.xlu0 %706
        %709 = vmatprep.subr.bf16.mxu0 0
        %710 = vmatpush1.bf16.msra.mxu0 %v474
        %711 = vmatprep.subr.bf16.mxu0 0
        %712 = vmatpush1.bf16.msra.mxu0 %v473
        %713 = vmatprep.subr.bf16.mxu0 0
        %714 = vmatpush1.bf16.msra.mxu0 %v472
        %715 = vmatprep.subr.bf16.mxu0 0
        %716 = vmatpush1.bf16.msra.mxu0 %v471
        %717 = vmatprep.subr.bf16.mxu0 0
        %718 = vmatpush1.bf16.msra.mxu0 %v470
        %719 = vmatprep.subr.bf16.mxu0 0
        %720 = vmatpush1.bf16.msra.mxu0 %v469
        %721 = vmatprep.subr.bf16.mxu0 0
        %722 = vmatpush1.bf16.msra.mxu0 %v468
        %723 = vmatprep.subr.bf16.mxu0 0
        %724 = vmatpush1.bf16.msra.mxu0 %v467
        %725 = vmatprep.subr.bf16.mxu0 0
        %726 = vmatpush2.bf16.msra.mxu0 0
        %727 = vmatprep.subr.bf16.mxu0 0
        %728 = vmatpush2.bf16.msra.mxu0 0
        %729 = vmatprep.subr.bf16.mxu0 0
        %730 = vmatpush2.bf16.msra.mxu0 0
        %731 = vmatprep.subr.bf16.mxu0 0
        %732 = vmatpush2.bf16.msra.mxu0 0
        %733 = vmatprep.subr.bf16.mxu0 0
        %734 = vmatpush2.bf16.msra.mxu0 0
        %735 = vmatprep.subr.bf16.mxu0 0
        %736 = vmatpush2.bf16.msra.mxu0 0
        %737 = vmatprep.subr.bf16.mxu0 0
        %738 = vmatpush2.bf16.msra.mxu0 0
        %739 = vmatprep.subr.bf16.mxu0 0
        %740 = vmatpush2.bf16.msra.mxu0 0
        %741 = vmatprep.mubr.bf16.mxu0 0
        %742 = vmatmul.mubr.bf16.gmra.mxu0 %v682
        %v743 = vpop.f32.mrf.mxu0
        %v744 = vadd.f32 %v692, %v743
        %v745 = vpop.f32.mrf.mxu0
        %v746 = vpop.f32.mrf.mxu0
        %v747 = vadd.f32 %v697, %v746
        %v748 = vpop.f32.mrf.mxu0
        %749 = vmatprep.mubr.bf16.mxu0 0
        %750 = vmatmul.mubr.bf16.gmra.mxu0 %v683
        %v751 = vpop.f32.mrf.mxu0
        %v752 = vadd.f32 %v702, %v751
        %v753 = vpop.f32.mrf.mxu0
        %v754 = vpop.f32.mrf.mxu0
        %v755 = vadd.f32 %v707, %v754
        %v756 = vpop.f32.mrf.mxu0
        %757 = vdwg.mxu0
        %758 = vst [vmem:[%s297] sm:$0xff] %v744
        %759 = vst [vmem:[%s297 + $0x8] sm:$0xff] %v747
        %760 = vst [vmem:[%s297 + $0x10] sm:$0xff] %v752
        %761 = vst [vmem:[%s297 + $0x18] sm:$0xff] %v755
        %s762 = sand.u32 %s124, 1
        %s763 = scalar_lea.sflag [#allocation4], %s762
        %s764 = sand.u32 %s124, 1
        %s765 = smul.addr %s764, 32
        %s766 = scalar_lea.vmem [#allocation8], %s765
        // Predicated region
        $region83: #{tpu_custom_call.1} parent=69 // pred_check
          %p767 = pneg %p134
        $region84: #{tpu_custom_call.1} parent=69 // pred_check_branch
          %769 = sbr.rel (%p767) target = $region86
        $region85: #{tpu_custom_call.1} parent=69 // pred_region
          %s771 = ssub.s32 512, 512
          %772 = vsyncadd %s763, %s771
          %s773 = smul.addr %s22, 128
          %s774 = scalar_lea.hbm %s4, %s773
          %s775 = sshll.u32 %s766, 4
          %s776 = int_to_ptr.vmem [resolvable:$true] %s775
          %781 = dma.vmem_to_hbm [thread:$0]  %s776, 512, %s774, %s763, 128, 256, 8
        $region86: #{tpu_custom_call.1} parent=69 // pred_fallthru
          _
      $region70: #{tpu_custom_call.1} parent=5 // pred_fallthru
        _
      %p782 = scmp.le.s32.totalorder 2, %s17
      // Predicated region
      $region87: #{tpu_custom_call.1} parent=5 // pred_check
        %p783 = pneg %p782
      $region88: #{tpu_custom_call.1} parent=5 // pred_check_branch
        %785 = sbr.rel (%p783) target = $region90
      $region89: #{tpu_custom_call.1} parent=5 // pred_region
        %s786 = ssub.s32 %s17, 2
        // Predicated region
        $region91: #{tpu_custom_call.1} parent=89 // pred_check
          %p787 = pneg %p140
        $region92: #{tpu_custom_call.1} parent=89 // pred_check_branch
          %789 = sbr.rel (%p787) target = $region94
        $region93: #{tpu_custom_call.1} parent=89 // pred_region
          %s790 = sand.u32 %s125, 1
          %s791 = scalar_lea.sflag [#allocation4], %s790
          %s792 = sand.u32 %s125, 1
          %s793 = smul.addr %s792, 32
          %s794 = scalar_lea.vmem [#allocation8], %s793
          %795 = dma.done %s791, 512
        $region94: #{tpu_custom_call.1} parent=89 // pred_fallthru
          _
      $region90: #{tpu_custom_call.1} parent=5 // pred_fallthru
        _
    $region6: #{tpu_custom_call.1} parent=1 // loop_footer
      %s21 = sadd.s32 1, %s17
    $region7: #{tpu_custom_call.1} parent=1 // loop_footer_branch
      %16 = sbr.rel target = $region3
    $region8: #{tpu_custom_call.1} parent=1 // loop_exit
      _
    %796 = vsyncpa [#allocation3], 1
    %s797 = scalar_lea.sflag [#allocation3], 1
    %798 = vsyncpa %s797, 1
    %799 = vsyncpa [#allocation7], 1
    %800 = vsyncpa [#allocation4], 1
    %s801 = scalar_lea.sflag [#allocation4], 1
    %802 = vsyncpa %s801, 1

</llo_original>
